<compile_context>
chip_gen: v7x
topology: tpu7x:2x2x1
jax: 0.10.0
libtpu: 0.0.40
codegen_flags: <defaults>
</compile_context>

<pallas_src>
import functools

import jax
import jax.numpy as jnp
from jax.experimental import pallas as pl
from jax.experimental.pallas import tpu as pltpu


# ---------------------------------------------------------------------------
# Kernel
# ---------------------------------------------------------------------------
def ran_cell_kernel(y_ref, c_ref, h_ref, wy_ref, wc_ref, wh_ref, b_ref,
                    m_prev_ref, c_epi_ref, out_ref, acc_ref):
    """Fused RAN cell step.

    y/c/h_ref     : (tm, tk)        compute dtype   activation tiles
    wy/wc/wh_ref  : (tk, 2*d_pad)   compute dtype   packed [Wi | Wf] per stream
    b_ref         : (1, 2*d_pad)    f32             [b1+b2+b3 | b4+b5+b6]
    m_prev_ref    : (tm, d_pad)     f32             previous m (broadcast per row)
    c_epi_ref     : (tm, d_pad)     f32             c for the epilogue i*c
    out_ref       : (tm, d_pad)     f32             m
    acc_ref       : (tm, 2*d_pad)   f32             resident VMEM accumulator
    """
    k = pl.program_id(1)

    # Bias added exactly once (hoisted out of the K reduction).
    @pl.when(k == 0)
    def _init():
        acc_ref[...] = jnp.broadcast_to(b_ref[...], acc_ref.shape)

    # Three MXU dot-accumulates per (i, k) step — no concatenated x_cat needed.
    acc_ref[...] += jnp.dot(y_ref[...], wy_ref[...],
                            preferred_element_type=jnp.float32)
    acc_ref[...] += jnp.dot(c_ref[...], wc_ref[...],
                            preferred_element_type=jnp.float32)
    acc_ref[...] += jnp.dot(h_ref[...], wh_ref[...],
                            preferred_element_type=jnp.float32)

    # Finalize: sigmoid + gate combine, all f32 (works on v5e's non-bf16 VPU/EUP).
    @pl.when(k == pl.num_programs(1) - 1)
    def _finalize():
        dp = out_ref.shape[-1]          # multiple of 128 -> lane-aligned split
        z = acc_ref[...]
        i_gate = jax.nn.sigmoid(z[:, :dp])
        f_gate = jax.nn.sigmoid(z[:, dp:])
        out_ref[...] = (m_prev_ref[...] * f_gate
                        + i_gate * c_epi_ref[...]).astype(out_ref.dtype)


# ---------------------------------------------------------------------------
# Helpers
# ---------------------------------------------------------------------------
def _round_up(x, m):
    return ((x + m - 1) // m) * m


def _pick_tile(dim, preferred, align):
    """Largest multiple of `align` <= preferred that divides `dim`.
    `dim` must itself be a multiple of `align` (guaranteed by padding)."""
    preferred = max(align, min(dim, preferred))
    t = (preferred // align) * align
    while t > align and dim % t != 0:
        t -= align
    return t


def _pad2(x, rows, cols):
    r, c = x.shape
    if r == rows and c == cols:
        return x
    return jnp.pad(x, ((0, rows - r), (0, cols - c)))


def _vmem_budget_bytes():
    """0.75 * physical VMEM: ~96 MiB on v5e/v6e, ~48 MiB on v7x."""
    try:
        cap = pltpu.get_tpu_info().vmem_capacity_bytes
    except Exception:
        cap = 128 * 1024 * 1024
    return int(0.75 * cap)


# ---------------------------------------------------------------------------
# One-time parameter packing (hoisted out of the per-step hot path)
# ---------------------------------------------------------------------------
def pack_ran_params(params, *, compute_dtype=jnp.bfloat16):
    """params: W1..W6 of shape (d, d) (PyTorch layout, out x in), b1..b6 of (d,).
    Returns padded, transposed, dtype-cast operands reused across timesteps."""
    d = params["W1"].shape[0]
    d_pad = _round_up(d, 128)

    def pad_w(w):                         # (d, d) -> transposed + zero-padded
        return _pad2(w.T, d_pad, d_pad)   # (d_pad, d_pad)

    w_y = jnp.concatenate([pad_w(params["W1"]), pad_w(params["W4"])],
                          axis=1).astype(compute_dtype)          # (d_pad, 2*d_pad)
    w_c = jnp.concatenate([pad_w(params["W2"]), pad_w(params["W5"])],
                          axis=1).astype(compute_dtype)
    w_h = jnp.concatenate([pad_w(params["W3"]), pad_w(params["W6"])],
                          axis=1).astype(compute_dtype)

    b_i = jnp.pad(params["b1"] + params["b2"] + params["b3"], (0, d_pad - d))
    b_f = jnp.pad(params["b4"] + params["b5"] + params["b6"], (0, d_pad - d))
    b_cat = jnp.concatenate([b_i, b_f]).reshape(1, 2 * d_pad).astype(jnp.float32)

    return {"w_y": w_y, "w_c": w_c, "w_h": w_h, "b": b_cat}


# ---------------------------------------------------------------------------
# Hot-path forward (jit-able; packed params are plain arrays)
# ---------------------------------------------------------------------------
@functools.partial(jax.jit, static_argnames=())
def ran_cell_forward(y, c, hidden, m_prev, packed):
    """y, c, hidden: (B, d). m_prev: (1, d) or (B, d). Returns m: (B, d) f32."""
    B, d = y.shape
    w_y, w_c, w_h, b_cat = packed["w_y"], packed["w_c"], packed["w_h"], packed["b"]
    compute_dtype = w_y.dtype
    d_pad = w_y.shape[0]
    N = 2 * d_pad

    # --- pad / cast activations (no-ops when shapes are already aligned) ---
    B_pad = _round_up(B, 8)
    y_p = _pad2(y, B_pad, d_pad).astype(compute_dtype)
    c_p = _pad2(c, B_pad, d_pad).astype(compute_dtype)
    h_p = _pad2(hidden, B_pad, d_pad).astype(compute_dtype)
    c_epi = _pad2(c.astype(jnp.float32), B_pad, d_pad)
    m_prev_b = jnp.broadcast_to(m_prev.astype(jnp.float32), (B, d))  # (1,d) or (B,d)
    m_prev_p = _pad2(m_prev_b, B_pad, d_pad)

    # --- tile selection ---
    vmem_budget = _vmem_budget_bytes()
    itemsize = jnp.dtype(compute_dtype).itemsize

    tm_pref = 256
    if B_pad >= 16:                       # >= 2 batch tiles -> v7x 2-TC sharding
        tm_pref = min(tm_pref, B_pad // 2)
    tm = _pick_tile(B_pad, tm_pref, 8)

    def vmem_usage(tk):
        w = 3 * 2 * tk * N * itemsize                 # weight tiles, double-buffered
        x = 3 * 2 * tm * tk * itemsize                # y/c/h tiles, double-buffered
        epi = 2 * (3 * tm * d_pad * 4 + N * 4)        # m_prev + c_epi + out + bias
        acc = tm * N * 4
        return w + x + epi + acc

    tk = 128
    for cand in range(d_pad, 127, -128):              # largest divisor of d_pad
        if d_pad % cand == 0 and vmem_usage(cand) <= int(0.6 * vmem_budget):
            tk = cand
            break

    grid = (B_pad // tm, d_pad // tk)

    cost = pl.CostEstimate(
        flops=2 * B_pad * (3 * d_pad) * N,
        transcendentals=2 * B_pad * d_pad,
        bytes_accessed=(3 * B_pad * d_pad * itemsize          # y, c, h
                        + 3 * d_pad * N * itemsize            # packed weights
                        + N * 4                                # bias
                        + 3 * B_pad * d_pad * 4),              # m_prev, c_epi, out
    )

    out = pl.pallas_call(
        ran_cell_kernel,
        out_shape=jax.ShapeDtypeStruct((B_pad, d_pad), jnp.float32),
        grid_spec=pltpu.PrefetchScalarGridSpec(
            num_scalar_prefetch=0,
            grid=grid,
            in_specs=[
                pl.BlockSpec((tm, tk), lambda i, k: (i, k)),    # y
                pl.BlockSpec((tm, tk), lambda i, k: (i, k)),    # c (matmul stream)
                pl.BlockSpec((tm, tk), lambda i, k: (i, k)),    # h
                pl.BlockSpec((tk, N), lambda i, k: (k, 0)),     # [W1t|W4t] padded
                pl.BlockSpec((tk, N), lambda i, k: (k, 0)),     # [W2t|W5t] padded
                pl.BlockSpec((tk, N), lambda i, k: (k, 0)),     # [W3t|W6t] padded
                pl.BlockSpec((1, N), lambda i, k: (0, 0)),      # summed biases
                pl.BlockSpec((tm, d_pad), lambda i, k: (i, 0)),  # m_prev
                pl.BlockSpec((tm, d_pad), lambda i, k: (i, 0)),  # c (f32 epilogue)
            ],
            out_specs=pl.BlockSpec((tm, d_pad), lambda i, k: (i, 0)),
            scratch_shapes=[pltpu.VMEM((tm, N), jnp.float32)],
        ),
        compiler_params=pltpu.CompilerParams(
            dimension_semantics=("parallel", "arbitrary"),
            vmem_limit_bytes=vmem_budget,
        ),
        cost_estimate=cost,
    )(y_p, c_p, h_p, w_y, w_c, w_h, b_cat, m_prev_p, c_epi)

    return out[:B, :d]


# ---------------------------------------------------------------------------
# Pure-JAX reference
# ---------------------------------------------------------------------------
def ran_cell_reference(y, c, hidden, m_prev, params):
    lin = lambda x, W, b: x @ W.T + b
    z_i = (lin(y, params["W1"], params["b1"])
           + lin(c, params["W2"], params["b2"])
           + lin(hidden, params["W3"], params["b3"]))
    z_f = (lin(y, params["W4"], params["b4"])
           + lin(c, params["W5"], params["b5"])
           + lin(hidden, params["W6"], params["b6"]))
    return m_prev * jax.nn.sigmoid(z_f) + jax.nn.sigmoid(z_i) * c


# ---------------------------------------------------------------------------
if __name__ == "__main__":
    B, d = 2, 32  # matches the tiny RAN_Cell (batch_size=2, hidden size d=32)

    key = jax.random.PRNGKey(0)
    keys = jax.random.split(key, 16)

    scale = 1.0 / jnp.sqrt(d)
    params = {}
    for k in range(1, 7):
        params[f"W{k}"] = jax.random.uniform(
            keys[k - 1], (d, d), jnp.float32, -scale, scale)
        params[f"b{k}"] = jax.random.uniform(
            keys[5 + k], (d,), jnp.float32, -scale, scale)

    y = jax.random.normal(keys[12], (B, d), jnp.float32)
    c = jax.random.normal(keys[13], (B, d), jnp.float32)
    hidden = jax.random.normal(keys[14], (B, d), jnp.float32)
    m_prev = jnp.zeros((1, d), jnp.float32)   # former_m initial (1, d) zero state

    m_ref = ran_cell_reference(y, c, hidden, m_prev, params)

    # Exactness of the fusion itself (f32 compute path).
    packed_f32 = pack_ran_params(params, compute_dtype=jnp.float32)
    m_f32 = ran_cell_forward(y, c, hidden, m_prev, packed_f32)
    jax.block_until_ready(m_f32)
    assert m_f32.shape == (B, d)
    assert jnp.allclose(m_f32, m_ref, atol=1e-5, rtol=1e-5), "f32 mismatch vs reference"

    # Default fast path: bf16 MXU inputs, f32 accumulation / epilogue.
    packed = pack_ran_params(params)  # bf16, reused across timesteps
    m = ran_cell_forward(y, c, hidden, m_prev, packed)
    jax.block_until_ready(m)
    assert m.shape == (B, d)
    assert jnp.allclose(m, m_ref, atol=2e-2, rtol=2e-2), "bf16 mismatch vs reference"

    print("KERNEL_OK")
</pallas_src>

<mosaic_0001>
module attributes {stable_mosaic.version = 11 : i64} {
  func.func @ran_cell_kernel(%arg0: i32, %arg1: i32, %arg2: memref<8x128xf32, #tpu.memory_space<vmem>>, %arg3: memref<8x128xf32, #tpu.memory_space<vmem>>, %arg4: memref<8x128xf32, #tpu.memory_space<vmem>>, %arg5: memref<128x256xf32, #tpu.memory_space<vmem>>, %arg6: memref<128x256xf32, #tpu.memory_space<vmem>>, %arg7: memref<128x256xf32, #tpu.memory_space<vmem>>, %arg8: memref<1x256xf32, #tpu.memory_space<vmem>>, %arg9: memref<8x128xf32, #tpu.memory_space<vmem>>, %arg10: memref<8x128xf32, #tpu.memory_space<vmem>>, %arg11: memref<8x128xf32, #tpu.memory_space<vmem>>, %arg12: memref<8x256xf32, #tpu.memory_space<vmem>>) attributes {dimension_semantics = [#tpu.dimension_semantics<parallel>, #tpu.dimension_semantics<arbitrary>], iteration_bounds = array<i64: 1, 1>, scalar_prefetch = 0 : i64, scratch_operands = 1 : i64, tpu.core_type = #tpu.core_type<tc>, window_params = [{transform_indices = @transform_0, window_bounds = array<i64: 8, 128>}, {transform_indices = @transform_1, window_bounds = array<i64: 8, 128>}, {transform_indices = @transform_2, window_bounds = array<i64: 8, 128>}, {transform_indices = @transform_3, window_bounds = array<i64: 128, 256>}, {transform_indices = @transform_4, window_bounds = array<i64: 128, 256>}, {transform_indices = @transform_5, window_bounds = array<i64: 128, 256>}, {pipeline_mode = #tpu.pipeline_mode<synchronous>, transform_indices = @transform_6, window_bounds = array<i64: 1, 256>}, {transform_indices = @transform_7, window_bounds = array<i64: 8, 128>}, {transform_indices = @transform_8, window_bounds = array<i64: 8, 128>}, {transform_indices = @transform_9, window_bounds = array<i64: 8, 128>}]} {
    %c0_i32 = arith.constant 0 : i32
    %0 = arith.cmpi eq, %arg1, %c0_i32 : i32
    %1 = arith.extui %0 : i1 to i32
    %c0_i32_0 = arith.constant 0 : i32
    %2 = arith.cmpi ne, %1, %c0_i32_0 : i32
    scf.if %2 {
      %c0_28 = arith.constant 0 : index
      %c0_29 = arith.constant 0 : index
      %24 = vector.load %arg8[%c0_28, %c0_29] : memref<1x256xf32, #tpu.memory_space<vmem>>, vector<1x256xf32>
      %25 = vector.shape_cast %24 : vector<1x256xf32> to vector<1x256xf32>
      %26 = vector.broadcast %25 : vector<1x256xf32> to vector<8x256xf32>
      %c0_30 = arith.constant 0 : index
      %c0_31 = arith.constant 0 : index
      %27 = vector.load %arg12[%c0_30, %c0_31] : memref<8x256xf32, #tpu.memory_space<vmem>>, vector<8x256xf32>
      tpu.vector_store %arg12[%c0_30, %c0_31], %26 {strides = array<i32>} : memref<8x256xf32, #tpu.memory_space<vmem>>, vector<8x256xf32>,
    } else {
    }
    %c0 = arith.constant 0 : index
    %c0_1 = arith.constant 0 : index
    %3 = vector.load %arg12[%c0, %c0_1] : memref<8x256xf32, #tpu.memory_space<vmem>>, vector<8x256xf32>
    %c0_2 = arith.constant 0 : index
    %c0_3 = arith.constant 0 : index
    %4 = vector.load %arg2[%c0_2, %c0_3] : memref<8x128xf32, #tpu.memory_space<vmem>>, vector<8x128xf32>
    %c0_4 = arith.constant 0 : index
    %c0_5 = arith.constant 0 : index
    %5 = vector.load %arg5[%c0_4, %c0_5] : memref<128x256xf32, #tpu.memory_space<vmem>>, vector<128x256xf32>
    %cst = arith.constant dense<0.000000e+00> : vector<8x256xf32>
    %6 = tpu.matmul %4, %5, %cst {dimension_numbers = #tpu.dot_dimension_numbers<[1], [0], [0], [1], [0, 0, 1, 1], [], []>} : vector<8x128xf32>, vector<128x256xf32>, vector<8x256xf32> -> vector<8x256xf32>
    %7 = arith.addf %3, %6 : vector<8x256xf32>
    %c0_6 = arith.constant 0 : index
    %c0_7 = arith.constant 0 : index
    %8 = vector.load %arg12[%c0_6, %c0_7] : memref<8x256xf32, #tpu.memory_space<vmem>>, vector<8x256xf32>
    tpu.vector_store %arg12[%c0_6, %c0_7], %7 {strides = array<i32>} : memref<8x256xf32, #tpu.memory_space<vmem>>, vector<8x256xf32>,
    %c0_8 = arith.constant 0 : index
    %c0_9 = arith.constant 0 : index
    %9 = vector.load %arg12[%c0_8, %c0_9] : memref<8x256xf32, #tpu.memory_space<vmem>>, vector<8x256xf32>
    %c0_10 = arith.constant 0 : index
    %c0_11 = arith.constant 0 : index
    %10 = vector.load %arg3[%c0_10, %c0_11] : memref<8x128xf32, #tpu.memory_space<vmem>>, vector<8x128xf32>
    %c0_12 = arith.constant 0 : index
    %c0_13 = arith.constant 0 : index
    %11 = vector.load %arg6[%c0_12, %c0_13] : memref<128x256xf32, #tpu.memory_space<vmem>>, vector<128x256xf32>
    %cst_14 = arith.constant dense<0.000000e+00> : vector<8x256xf32>
    %12 = tpu.matmul %10, %11, %cst_14 {dimension_numbers = #tpu.dot_dimension_numbers<[1], [0], [0], [1], [0, 0, 1, 1], [], []>} : vector<8x128xf32>, vector<128x256xf32>, vector<8x256xf32> -> vector<8x256xf32>
    %13 = arith.addf %9, %12 : vector<8x256xf32>
    %c0_15 = arith.constant 0 : index
    %c0_16 = arith.constant 0 : index
    %14 = vector.load %arg12[%c0_15, %c0_16] : memref<8x256xf32, #tpu.memory_space<vmem>>, vector<8x256xf32>
    tpu.vector_store %arg12[%c0_15, %c0_16], %13 {strides = array<i32>} : memref<8x256xf32, #tpu.memory_space<vmem>>, vector<8x256xf32>,
    %c0_17 = arith.constant 0 : index
    %c0_18 = arith.constant 0 : index
    %15 = vector.load %arg12[%c0_17, %c0_18] : memref<8x256xf32, #tpu.memory_space<vmem>>, vector<8x256xf32>
    %c0_19 = arith.constant 0 : index
    %c0_20 = arith.constant 0 : index
    %16 = vector.load %arg4[%c0_19, %c0_20] : memref<8x128xf32, #tpu.memory_space<vmem>>, vector<8x128xf32>
    %c0_21 = arith.constant 0 : index
    %c0_22 = arith.constant 0 : index
    %17 = vector.load %arg7[%c0_21, %c0_22] : memref<128x256xf32, #tpu.memory_space<vmem>>, vector<128x256xf32>
    %cst_23 = arith.constant dense<0.000000e+00> : vector<8x256xf32>
    %18 = tpu.matmul %16, %17, %cst_23 {dimension_numbers = #tpu.dot_dimension_numbers<[1], [0], [0], [1], [0, 0, 1, 1], [], []>} : vector<8x128xf32>, vector<128x256xf32>, vector<8x256xf32> -> vector<8x256xf32>
    %19 = arith.addf %15, %18 : vector<8x256xf32>
    %c0_24 = arith.constant 0 : index
    %c0_25 = arith.constant 0 : index
    %20 = vector.load %arg12[%c0_24, %c0_25] : memref<8x256xf32, #tpu.memory_space<vmem>>, vector<8x256xf32>
    tpu.vector_store %arg12[%c0_24, %c0_25], %19 {strides = array<i32>} : memref<8x256xf32, #tpu.memory_space<vmem>>, vector<8x256xf32>,
    %c0_i32_26 = arith.constant 0 : i32
    %21 = arith.cmpi eq, %arg1, %c0_i32_26 : i32
    %22 = arith.extui %21 : i1 to i32
    %c0_i32_27 = arith.constant 0 : i32
    %23 = arith.cmpi ne, %22, %c0_i32_27 : i32
    scf.if %23 {
      %c0_28 = arith.constant 0 : index
      %c0_29 = arith.constant 0 : index
      %24 = vector.load %arg12[%c0_28, %c0_29] : memref<8x256xf32, #tpu.memory_space<vmem>>, vector<8x256xf32>
      %25 = vector.extract_strided_slice %24 {offsets = [0, 0], sizes = [8, 128], strides = [1, 1]} : vector<8x256xf32> to vector<8x128xf32>
      %26 = arith.negf %25 : vector<8x128xf32>
      %27 = math.exp %26 : vector<8x128xf32>
      %cst_30 = arith.constant 1.000000e+00 : f32
      %28 = vector.broadcast %cst_30 : f32 to vector<8x128xf32>
      %29 = arith.addf %28, %27 : vector<8x128xf32>
      %30 = arith.divf %28, %29 : vector<8x128xf32>
      %31 = vector.extract_strided_slice %24 {offsets = [0, 128], sizes = [8, 128], strides = [1, 1]} : vector<8x256xf32> to vector<8x128xf32>
      %32 = arith.negf %31 : vector<8x128xf32>
      %33 = math.exp %32 : vector<8x128xf32>
      %cst_31 = arith.constant 1.000000e+00 : f32
      %34 = vector.broadcast %cst_31 : f32 to vector<8x128xf32>
      %35 = arith.addf %34, %33 : vector<8x128xf32>
      %36 = arith.divf %34, %35 : vector<8x128xf32>
      %c0_32 = arith.constant 0 : index
      %c0_33 = arith.constant 0 : index
      %37 = vector.load %arg9[%c0_32, %c0_33] : memref<8x128xf32, #tpu.memory_space<vmem>>, vector<8x128xf32>
      %38 = arith.mulf %37, %36 : vector<8x128xf32>
      %c0_34 = arith.constant 0 : index
      %c0_35 = arith.constant 0 : index
      %39 = vector.load %arg10[%c0_34, %c0_35] : memref<8x128xf32, #tpu.memory_space<vmem>>, vector<8x128xf32>
      %40 = arith.mulf %30, %39 : vector<8x128xf32>
      %41 = arith.addf %38, %40 : vector<8x128xf32>
      %c0_36 = arith.constant 0 : index
      %c0_37 = arith.constant 0 : index
      %42 = vector.load %arg11[%c0_36, %c0_37] : memref<8x128xf32, #tpu.memory_space<vmem>>, vector<8x128xf32>
      tpu.vector_store %arg11[%c0_36, %c0_37], %41 {strides = array<i32>} : memref<8x128xf32, #tpu.memory_space<vmem>>, vector<8x128xf32>,
    } else {
    }
    return
  }
  func.func @transform_0(%arg0: i32, %arg1: i32) -> (i32, i32) {
    %c0_i32 = arith.constant 0 : i32
    return %arg0, %arg1 : i32, i32
  }
  func.func @transform_1(%arg0: i32, %arg1: i32) -> (i32, i32) {
    %c0_i32 = arith.constant 0 : i32
    return %arg0, %arg1 : i32, i32
  }
  func.func @transform_2(%arg0: i32, %arg1: i32) -> (i32, i32) {
    %c0_i32 = arith.constant 0 : i32
    return %arg0, %arg1 : i32, i32
  }
  func.func @transform_3(%arg0: i32, %arg1: i32) -> (i32, i32) {
    %c0_i32 = arith.constant 0 : i32
    %c0_i32_0 = arith.constant 0 : i32
    return %arg1, %c0_i32 : i32, i32
  }
  func.func @transform_4(%arg0: i32, %arg1: i32) -> (i32, i32) {
    %c0_i32 = arith.constant 0 : i32
    %c0_i32_0 = arith.constant 0 : i32
    return %arg1, %c0_i32 : i32, i32
  }
  func.func @transform_5(%arg0: i32, %arg1: i32) -> (i32, i32) {
    %c0_i32 = arith.constant 0 : i32
    %c0_i32_0 = arith.constant 0 : i32
    return %arg1, %c0_i32 : i32, i32
  }
  func.func @transform_6(%arg0: i32, %arg1: i32) -> (i32, i32) {
    %c0_i32 = arith.constant 0 : i32
    %c0_i32_0 = arith.constant 0 : i32
    %c0_i32_1 = arith.constant 0 : i32
    return %c0_i32, %c0_i32_0 : i32, i32
  }
  func.func @transform_7(%arg0: i32, %arg1: i32) -> (i32, i32) {
    %c0_i32 = arith.constant 0 : i32
    %c0_i32_0 = arith.constant 0 : i32
    return %arg0, %c0_i32 : i32, i32
  }
  func.func @transform_8(%arg0: i32, %arg1: i32) -> (i32, i32) {
    %c0_i32 = arith.constant 0 : i32
    %c0_i32_0 = arith.constant 0 : i32
    return %arg0, %c0_i32 : i32, i32
  }
  func.func @transform_9(%arg0: i32, %arg1: i32) -> (i32, i32) {
    %c0_i32 = arith.constant 0 : i32
    %c0_i32_0 = arith.constant 0 : i32
    return %arg0, %c0_i32 : i32, i32
  }
}

</mosaic_0001>

<llo_original>
// kernel: ran_cell_forward.1
$region0: #{ran_cell_forward.1}
  #allocation0 [shape = 'u32[]', space=smem, size = 0x4, offset = 0x4, fixed_abs, tag = 'smem constant byte address 0x4 - core index']
  #allocation1 [shape = 'u32[144,128]{1,0:T(1,128)}', space=vmem, size = 0x12000, scoped, tag = 'internal scratch']
  #allocation2 [shape = 'f32[8,256]{1,0:T(8,128)}', space=vmem, size = 0x2000, scoped, tag = 'scratch operand']
  %s0 = inlined_call_operand.hbm [shape: f32[8,128], index: 0, kind: input, shape index: {}]
  %s1 = inlined_call_operand.hbm [shape: f32[8,128], index: 1, kind: input, shape index: {}, may-alias: {1,8}]
  %s2 = inlined_call_operand.hbm [shape: f32[8,128], index: 2, kind: input, shape index: {}]
  %s3 = inlined_call_operand.hbm [shape: f32[128,256], index: 3, kind: input, shape index: {}]
  %s4 = inlined_call_operand.hbm [shape: f32[128,256], index: 4, kind: input, shape index: {}]
  %s5 = inlined_call_operand.hbm [shape: f32[128,256], index: 5, kind: input, shape index: {}]
  %s6 = inlined_call_operand.hbm [shape: f32[1,256], index: 6, kind: input, shape index: {}]
  %s7 = inlined_call_operand.hbm [shape: f32[8,128], index: 7, kind: input, shape index: {}]
  %s8 = inlined_call_operand.hbm [shape: f32[8,128], index: 8, kind: input, shape index: {}, may-alias: {1,8}]
  %s9 = inlined_call_operand.hbm [shape: f32[8,128], index: 9, kind: output, shape index: {}]
  %s10 = sld [smem:[#allocation0]]
  $region90: #{ran_cell_forward.1} parent=0
    _
  %s12 = ssub.s32 1, %s10
  %s13 = scalar_select 0, %s12, %s10
  $region1: #{ran_cell_forward.1} parent=0
    #allocation3 [shape = 'u8[4096]{0}', space=vmem, size = 0x1000, scoped, tag = 'input window, operand 0, single buffered']
    #allocation4 [shape = 's32[1]{0}', space=sflag, size = 0x4, scoped, tag = 'scoped memory for ran_cell_forward.1']
    #allocation5 [shape = 's32[1]{0}', space=sflag, size = 0x4, scoped, tag = 'scoped memory for ran_cell_forward.1']
    #allocation6 [shape = 'u8[4096]{0}', space=vmem, size = 0x1000, scoped, tag = 'input window, operand 1, single buffered']
    #allocation7 [shape = 's32[1]{0}', space=sflag, size = 0x4, scoped, tag = 'scoped memory for ran_cell_forward.1']
    #allocation8 [shape = 'u8[4096]{0}', space=vmem, size = 0x1000, scoped, tag = 'input window, operand 2, single buffered']
    #allocation9 [shape = 'u8[131072]{0}', space=vmem, size = 0x20000, scoped, tag = 'input window, operand 3, single buffered']
    #allocation10 [shape = 's32[1]{0}', space=sflag, size = 0x4, scoped, tag = 'scoped memory for ran_cell_forward.1']
    #allocation11 [shape = 'u8[131072]{0}', space=vmem, size = 0x20000, scoped, tag = 'input window, operand 4, single buffered']
    #allocation12 [shape = 'u8[131072]{0}', space=vmem, size = 0x20000, scoped, tag = 'input window, operand 5, single buffered']
    #allocation13 [shape = 's32[1]{0}', space=sflag, size = 0x4, scoped, tag = 'scoped memory for ran_cell_forward.1']
    #allocation14 [shape = 'u8[1024]{0}', space=vmem, size = 0x400, scoped, tag = 'input window, operand 6, single buffered']
    #allocation15 [shape = 'u8[4096]{0}', space=vmem, size = 0x1000, scoped, tag = 'input window, operand 7, single buffered']
    #allocation16 [shape = 's32[1]{0}', space=sflag, size = 0x4, scoped, tag = 'scoped memory for ran_cell_forward.1']
    #allocation17 [shape = 'u8[4096]{0}', space=vmem, size = 0x1000, scoped, tag = 'input window, operand 8, single buffered']
    #allocation18 [shape = 'u8[4096]{0}', space=vmem, size = 0x1000, scoped, tag = 'output window, operand 0, single buffered']
    %14 = vsyncpa [#allocation4], 0
    %15 = vsyncpa [#allocation7], 0
    %16 = vsyncpa [#allocation10], 0
    %17 = vsyncpa [#allocation13], 0
    %18 = vsyncpa [#allocation16], 0
    %19 = vsyncpa [#allocation5], 0
    // Predicated region
    $region2: #{ran_cell_forward.1} parent=1 // pred_check
      _
    $region3: #{ran_cell_forward.1} parent=1 // pred_check_branch
      %21 = sbr.rel (0) target = $region5
    $region4: #{ran_cell_forward.1} parent=1 // pred_region
      %s23 = ssub.s32 128, 128
      %24 = vsyncadd [#allocation4], %s23
      %s26 = sshll.u32 [#allocation3], 4
      %s27 = int_to_ptr.vmem [resolvable:$true] %s26
      %29 = dma.hbm_to_vmem [thread:$0]  %s0, 128, %s27, [#allocation4]
    $region5: #{ran_cell_forward.1} parent=1 // pred_fallthru
      _
    // Predicated region
    $region6: #{ran_cell_forward.1} parent=1 // pred_check
      _
    $region7: #{ran_cell_forward.1} parent=1 // pred_check_branch
      %31 = sbr.rel (0) target = $region9
    $region8: #{ran_cell_forward.1} parent=1 // pred_region
      %s33 = ssub.s32 128, 128
      %34 = vsyncadd [#allocation7], %s33
      %s36 = sshll.u32 [#allocation6], 4
      %s37 = int_to_ptr.vmem [resolvable:$true] %s36
      %39 = dma.hbm_to_vmem [thread:$0]  %s1, 128, %s37, [#allocation7]
    $region9: #{ran_cell_forward.1} parent=1 // pred_fallthru
      _
    // Predicated region
    $region10: #{ran_cell_forward.1} parent=1 // pred_check
      _
    $region11: #{ran_cell_forward.1} parent=1 // pred_check_branch
      %41 = sbr.rel (0) target = $region13
    $region12: #{ran_cell_forward.1} parent=1 // pred_region
      %s43 = ssub.s32 128, 128
      %44 = vsyncadd [#allocation7], %s43
      %s46 = sshll.u32 [#allocation8], 4
      %s47 = int_to_ptr.vmem [resolvable:$true] %s46
      %49 = dma.hbm_to_vmem [thread:$0]  %s2, 128, %s47, [#allocation7]
    $region13: #{ran_cell_forward.1} parent=1 // pred_fallthru
      _
    // Predicated region
    $region14: #{ran_cell_forward.1} parent=1 // pred_check
      _
    $region15: #{ran_cell_forward.1} parent=1 // pred_check_branch
      %51 = sbr.rel (0) target = $region17
    $region16: #{ran_cell_forward.1} parent=1 // pred_region
      %s53 = ssub.s32 4096, 4096
      %54 = vsyncadd [#allocation10], %s53
      %s55 = sshll.u32 [#allocation9], 4
      %s56 = int_to_ptr.vmem [resolvable:$true] %s55
      %61 = dma.hbm_to_vmem [thread:$0]  %s3, 4096, %s56, [#allocation10], 256, 256, 16
    $region17: #{ran_cell_forward.1} parent=1 // pred_fallthru
      _
    // Predicated region
    $region18: #{ran_cell_forward.1} parent=1 // pred_check
      _
    $region19: #{ran_cell_forward.1} parent=1 // pred_check_branch
      %63 = sbr.rel (0) target = $region21
    $region20: #{ran_cell_forward.1} parent=1 // pred_region
      %s65 = ssub.s32 4096, 4096
      %66 = vsyncadd [#allocation10], %s65
      %s67 = sshll.u32 [#allocation11], 4
      %s68 = int_to_ptr.vmem [resolvable:$true] %s67
      %73 = dma.hbm_to_vmem [thread:$0]  %s4, 4096, %s68, [#allocation10], 256, 256, 16
    $region21: #{ran_cell_forward.1} parent=1 // pred_fallthru
      _
    // Predicated region
    $region22: #{ran_cell_forward.1} parent=1 // pred_check
      _
    $region23: #{ran_cell_forward.1} parent=1 // pred_check_branch
      %75 = sbr.rel (0) target = $region25
    $region24: #{ran_cell_forward.1} parent=1 // pred_region
      %s77 = ssub.s32 4096, 4096
      %78 = vsyncadd [#allocation13], %s77
      %s79 = sshll.u32 [#allocation12], 4
      %s80 = int_to_ptr.vmem [resolvable:$true] %s79
      %85 = dma.hbm_to_vmem [thread:$0]  %s5, 4096, %s80, [#allocation13], 256, 256, 16
    $region25: #{ran_cell_forward.1} parent=1 // pred_fallthru
      _
    // Predicated region
    $region26: #{ran_cell_forward.1} parent=1 // pred_check
      _
    $region27: #{ran_cell_forward.1} parent=1 // pred_check_branch
      %87 = sbr.rel (0) target = $region29
    $region28: #{ran_cell_forward.1} parent=1 // pred_region
      %s89 = ssub.s32 32, 32
      %90 = vsyncadd [#allocation13], %s89
      %s92 = sshll.u32 [#allocation14], 4
      %s93 = int_to_ptr.vmem [resolvable:$true] %s92
      %95 = dma.hbm_to_vmem [thread:$0]  %s6, 32, %s93, [#allocation13]
    $region29: #{ran_cell_forward.1} parent=1 // pred_fallthru
      _
    // Predicated region
    $region30: #{ran_cell_forward.1} parent=1 // pred_check
      _
    $region31: #{ran_cell_forward.1} parent=1 // pred_check_branch
      %97 = sbr.rel (0) target = $region33
    $region32: #{ran_cell_forward.1} parent=1 // pred_region
      %s99 = ssub.s32 128, 128
      %100 = vsyncadd [#allocation16], %s99
      %s102 = sshll.u32 [#allocation15], 4
      %s103 = int_to_ptr.vmem [resolvable:$true] %s102
      %105 = dma.hbm_to_vmem [thread:$0]  %s7, 128, %s103, [#allocation16]
    $region33: #{ran_cell_forward.1} parent=1 // pred_fallthru
      _
    // Predicated region
    $region34: #{ran_cell_forward.1} parent=1 // pred_check
      _
    $region35: #{ran_cell_forward.1} parent=1 // pred_check_branch
      %107 = sbr.rel (0) target = $region37
    $region36: #{ran_cell_forward.1} parent=1 // pred_region
      %s109 = ssub.s32 128, 128
      %110 = vsyncadd [#allocation16], %s109
      %s112 = sshll.u32 [#allocation17], 4
      %s113 = int_to_ptr.vmem [resolvable:$true] %s112
      %115 = dma.hbm_to_vmem [thread:$0]  %s8, 128, %s113, [#allocation16]
    $region37: #{ran_cell_forward.1} parent=1 // pred_fallthru
      _
    // Predicated region
    $region38: #{ran_cell_forward.1} parent=1 // pred_check
      _
    $region39: #{ran_cell_forward.1} parent=1 // pred_check_branch
      %117 = sbr.rel (0) target = $region41
    $region40: #{ran_cell_forward.1} parent=1 // pred_region
      %118 = dma.done [#allocation4], 128
    $region41: #{ran_cell_forward.1} parent=1 // pred_fallthru
      _
    // Predicated region
    $region42: #{ran_cell_forward.1} parent=1 // pred_check
      _
    $region43: #{ran_cell_forward.1} parent=1 // pred_check_branch
      %120 = sbr.rel (0) target = $region45
    $region44: #{ran_cell_forward.1} parent=1 // pred_region
      %121 = dma.done [#allocation7], 128
    $region45: #{ran_cell_forward.1} parent=1 // pred_fallthru
      _
    // Predicated region
    $region46: #{ran_cell_forward.1} parent=1 // pred_check
      _
    $region47: #{ran_cell_forward.1} parent=1 // pred_check_branch
      %123 = sbr.rel (0) target = $region49
    $region48: #{ran_cell_forward.1} parent=1 // pred_region
      %124 = dma.done [#allocation7], 128
    $region49: #{ran_cell_forward.1} parent=1 // pred_fallthru
      _
    // Predicated region
    $region50: #{ran_cell_forward.1} parent=1 // pred_check
      _
    $region51: #{ran_cell_forward.1} parent=1 // pred_check_branch
      %126 = sbr.rel (0) target = $region53
    $region52: #{ran_cell_forward.1} parent=1 // pred_region
      %127 = dma.done [#allocation10], 4096
    $region53: #{ran_cell_forward.1} parent=1 // pred_fallthru
      _
    // Predicated region
    $region54: #{ran_cell_forward.1} parent=1 // pred_check
      _
    $region55: #{ran_cell_forward.1} parent=1 // pred_check_branch
      %129 = sbr.rel (0) target = $region57
    $region56: #{ran_cell_forward.1} parent=1 // pred_region
      %130 = dma.done [#allocation10], 4096
    $region57: #{ran_cell_forward.1} parent=1 // pred_fallthru
      _
    // Predicated region
    $region58: #{ran_cell_forward.1} parent=1 // pred_check
      _
    $region59: #{ran_cell_forward.1} parent=1 // pred_check_branch
      %132 = sbr.rel (0) target = $region61
    $region60: #{ran_cell_forward.1} parent=1 // pred_region
      %133 = dma.done [#allocation13], 4096
    $region61: #{ran_cell_forward.1} parent=1 // pred_fallthru
      _
    // Predicated region
    $region62: #{ran_cell_forward.1} parent=1 // pred_check
      _
    $region63: #{ran_cell_forward.1} parent=1 // pred_check_branch
      %135 = sbr.rel (0) target = $region65
    $region64: #{ran_cell_forward.1} parent=1 // pred_region
      %136 = dma.done [#allocation13], 32
    $region65: #{ran_cell_forward.1} parent=1 // pred_fallthru
      _
    // Predicated region
    $region66: #{ran_cell_forward.1} parent=1 // pred_check
      _
    $region67: #{ran_cell_forward.1} parent=1 // pred_check_branch
      %138 = sbr.rel (0) target = $region69
    $region68: #{ran_cell_forward.1} parent=1 // pred_region
      %139 = dma.done [#allocation16], 128
    $region69: #{ran_cell_forward.1} parent=1 // pred_fallthru
      _
    // Predicated region
    $region70: #{ran_cell_forward.1} parent=1 // pred_check
      _
    $region71: #{ran_cell_forward.1} parent=1 // pred_check_branch
      %141 = sbr.rel (0) target = $region73
    $region72: #{ran_cell_forward.1} parent=1 // pred_region
      %142 = dma.done [#allocation16], 128
    $region73: #{ran_cell_forward.1} parent=1 // pred_fallthru
      _
    %p143 = scmp.eq.s32.totalorder 0, 0
    // Predicated region
    $region74: #{ran_cell_forward.1} parent=1 // pred_check
      %p144 = pneg %p143
    $region75: #{ran_cell_forward.1} parent=1 // pred_check_branch
      %146 = sbr.rel (%p144) target = $region77
    $region76: #{ran_cell_forward.1} parent=1 // pred_region
      %v147 = vld [vmem:[#allocation14] sm:$0x3]
      %v149 = vlaneseq
      %v150 = vshrl.u32 %v149, 7
      %v151 = vsub.s32 0, %v150
      %v152 = vrot.slane %v147, %v151
      %v153 = vlaneseq
      %v154 = vshrl.u32 %v153, 7
      %v155 = vsub.s32 1, %v154
      %v156 = vrot.slane %v147, %v155
      %159 = vst [vmem:[#allocation2] sm:$0xff] %v152
      %160 = vst [vmem:[#allocation2 + $0x8] sm:$0xff] %v156
    $region77: #{ran_cell_forward.1} parent=1 // pred_fallthru
      _
    %v161 = vld [vmem:[#allocation2] sm:$0xff]
    %v162 = vld [vmem:[#allocation2 + $0x8] sm:$0xff]
    %v163 = vld [vmem:[#allocation3] sm:$0xff]
    %v164 = vld [vmem:[#allocation9] sm:$0xff]
    %v165 = vld [vmem:[#allocation9 + $0x8] sm:$0xff]
    %v166 = vld [vmem:[#allocation9 + $0x10] sm:$0xff]
    %v167 = vld [vmem:[#allocation9 + $0x18] sm:$0xff]
    %v168 = vld [vmem:[#allocation9 + $0x20] sm:$0xff]
    %v169 = vld [vmem:[#allocation9 + $0x28] sm:$0xff]
    %v170 = vld [vmem:[#allocation9 + $0x30] sm:$0xff]
    %v171 = vld [vmem:[#allocation9 + $0x38] sm:$0xff]
    %v172 = vld [vmem:[#allocation9 + $0x40] sm:$0xff]
    %v173 = vld [vmem:[#allocation9 + $0x48] sm:$0xff]
    %v174 = vld [vmem:[#allocation9 + $0x50] sm:$0xff]
    %v175 = vld [vmem:[#allocation9 + $0x58] sm:$0xff]
    %v176 = vld [vmem:[#allocation9 + $0x60] sm:$0xff]
    %v177 = vld [vmem:[#allocation9 + $0x68] sm:$0xff]
    %v178 = vld [vmem:[#allocation9 + $0x70] sm:$0xff]
    %v179 = vld [vmem:[#allocation9 + $0x78] sm:$0xff]
    %v180 = vld [vmem:[#allocation9 + $0x80] sm:$0xff]
    %v181 = vld [vmem:[#allocation9 + $0x88] sm:$0xff]
    %v182 = vld [vmem:[#allocation9 + $0x90] sm:$0xff]
    %v183 = vld [vmem:[#allocation9 + $0x98] sm:$0xff]
    %v184 = vld [vmem:[#allocation9 + $0xa0] sm:$0xff]
    %v185 = vld [vmem:[#allocation9 + $0xa8] sm:$0xff]
    %v186 = vld [vmem:[#allocation9 + $0xb0] sm:$0xff]
    %v187 = vld [vmem:[#allocation9 + $0xb8] sm:$0xff]
    %v188 = vld [vmem:[#allocation9 + $0xc0] sm:$0xff]
    %v189 = vld [vmem:[#allocation9 + $0xc8] sm:$0xff]
    %v190 = vld [vmem:[#allocation9 + $0xd0] sm:$0xff]
    %v191 = vld [vmem:[#allocation9 + $0xd8] sm:$0xff]
    %v192 = vld [vmem:[#allocation9 + $0xe0] sm:$0xff]
    %v193 = vld [vmem:[#allocation9 + $0xe8] sm:$0xff]
    %v194 = vld [vmem:[#allocation9 + $0xf0] sm:$0xff]
    %v195 = vld [vmem:[#allocation9 + $0xf8] sm:$0xff]
    %196 = vmatprep.subr.mxu0 %v165
    %197 = vmatpush1.msra.mxu0 %v164
    %198 = vmatprep.subr.mxu0 %v167
    %199 = vmatpush1.msra.mxu0 %v166
    %200 = vmatprep.subr.mxu0 %v169
    %201 = vmatpush1.msra.mxu0 %v168
    %202 = vmatprep.subr.mxu0 %v171
    %203 = vmatpush1.msra.mxu0 %v170
    %204 = vmatprep.subr.mxu0 %v173
    %205 = vmatpush1.msra.mxu0 %v172
    %206 = vmatprep.subr.mxu0 %v175
    %207 = vmatpush1.msra.mxu0 %v174
    %208 = vmatprep.subr.mxu0 %v177
    %209 = vmatpush1.msra.mxu0 %v176
    %210 = vmatprep.subr.mxu0 %v179
    %211 = vmatpush1.msra.mxu0 %v178
    %212 = vmatprep.subr.mxu0 %v181
    %213 = vmatpush1.msra.mxu0 %v180
    %214 = vmatprep.subr.mxu0 %v183
    %215 = vmatpush1.msra.mxu0 %v182
    %216 = vmatprep.subr.mxu0 %v185
    %217 = vmatpush1.msra.mxu0 %v184
    %218 = vmatprep.subr.mxu0 %v187
    %219 = vmatpush1.msra.mxu0 %v186
    %220 = vmatprep.subr.mxu0 %v189
    %221 = vmatpush1.msra.mxu0 %v188
    %222 = vmatprep.subr.mxu0 %v191
    %223 = vmatpush1.msra.mxu0 %v190
    %224 = vmatprep.subr.mxu0 %v193
    %225 = vmatpush1.msra.mxu0 %v192
    %226 = vmatprep.subr.mxu0 %v195
    %227 = vmatpush1.msra.mxu0 %v194
    %228 = vmatprep.subr.mxu0 0.0
    %229 = vmatpush1.msra.mxu0 0.0
    %230 = vmatprep.subr.mxu0 0.0
    %231 = vmatpush1.msra.mxu0 0.0
    %232 = vmatprep.subr.mxu0 0.0
    %233 = vmatpush1.msra.mxu0 0.0
    %234 = vmatprep.subr.mxu0 0.0
    %235 = vmatpush1.msra.mxu0 0.0
    %236 = vmatprep.subr.mxu0 0.0
    %237 = vmatpush1.msra.mxu0 0.0
    %238 = vmatprep.subr.mxu0 0.0
    %239 = vmatpush1.msra.mxu0 0.0
    %240 = vmatprep.subr.mxu0 0.0
    %241 = vmatpush1.msra.mxu0 0.0
    %242 = vmatprep.subr.mxu0 0.0
    %243 = vmatpush1.msra.mxu0 0.0
    %244 = vmatprep.subr.mxu0 0.0
    %245 = vmatpush1.msra.mxu0 0.0
    %246 = vmatprep.subr.mxu0 0.0
    %247 = vmatpush1.msra.mxu0 0.0
    %248 = vmatprep.subr.mxu0 0.0
    %249 = vmatpush1.msra.mxu0 0.0
    %250 = vmatprep.subr.mxu0 0.0
    %251 = vmatpush1.msra.mxu0 0.0
    %252 = vmatprep.subr.mxu0 0.0
    %253 = vmatpush1.msra.mxu0 0.0
    %254 = vmatprep.subr.mxu0 0.0
    %255 = vmatpush1.msra.mxu0 0.0
    %256 = vmatprep.subr.mxu0 0.0
    %257 = vmatpush1.msra.mxu0 0.0
    %258 = vmatprep.subr.mxu0 0.0
    %259 = vmatpush1.msra.mxu0 0.0
    %260 = vmatprep.mubr.f32.mxu0 0.0
    %261 = vmatmul.mubr.f32.gmra.mrb[0].mxu0 %v163
    %v262 = vpop.f32.mrb[0].mxu0
    %v263 = vadd.f32 0.0, %v262
    %v264 = vpop.f32.mrb[0].mxu0
    %v265 = vadd.f32 0.0, %v264
    %266 = vdwg.mxu0
    %v267 = vadd.f32 %v161, %v263
    %v268 = vadd.f32 %v162, %v265
    %269 = vst [vmem:[#allocation2] sm:$0xff] %v267
    %270 = vst [vmem:[#allocation2 + $0x8] sm:$0xff] %v268
    %v271 = vld [vmem:[#allocation2] sm:$0xff]
    %v272 = vld [vmem:[#allocation2 + $0x8] sm:$0xff]
    %v273 = vld [vmem:[#allocation6] sm:$0xff]
    %v274 = vld [vmem:[#allocation11] sm:$0xff]
    %v275 = vld [vmem:[#allocation11 + $0x8] sm:$0xff]
    %v276 = vld [vmem:[#allocation11 + $0x10] sm:$0xff]
    %v277 = vld [vmem:[#allocation11 + $0x18] sm:$0xff]
    %v278 = vld [vmem:[#allocation11 + $0x20] sm:$0xff]
    %v279 = vld [vmem:[#allocation11 + $0x28] sm:$0xff]
    %v280 = vld [vmem:[#allocation11 + $0x30] sm:$0xff]
    %v281 = vld [vmem:[#allocation11 + $0x38] sm:$0xff]
    %v282 = vld [vmem:[#allocation11 + $0x40] sm:$0xff]
    %v283 = vld [vmem:[#allocation11 + $0x48] sm:$0xff]
    %v284 = vld [vmem:[#allocation11 + $0x50] sm:$0xff]
    %v285 = vld [vmem:[#allocation11 + $0x58] sm:$0xff]
    %v286 = vld [vmem:[#allocation11 + $0x60] sm:$0xff]
    %v287 = vld [vmem:[#allocation11 + $0x68] sm:$0xff]
    %v288 = vld [vmem:[#allocation11 + $0x70] sm:$0xff]
    %v289 = vld [vmem:[#allocation11 + $0x78] sm:$0xff]
    %v290 = vld [vmem:[#allocation11 + $0x80] sm:$0xff]
    %v291 = vld [vmem:[#allocation11 + $0x88] sm:$0xff]
    %v292 = vld [vmem:[#allocation11 + $0x90] sm:$0xff]
    %v293 = vld [vmem:[#allocation11 + $0x98] sm:$0xff]
    %v294 = vld [vmem:[#allocation11 + $0xa0] sm:$0xff]
    %v295 = vld [vmem:[#allocation11 + $0xa8] sm:$0xff]
    %v296 = vld [vmem:[#allocation11 + $0xb0] sm:$0xff]
    %v297 = vld [vmem:[#allocation11 + $0xb8] sm:$0xff]
    %v298 = vld [vmem:[#allocation11 + $0xc0] sm:$0xff]
    %v299 = vld [vmem:[#allocation11 + $0xc8] sm:$0xff]
    %v300 = vld [vmem:[#allocation11 + $0xd0] sm:$0xff]
    %v301 = vld [vmem:[#allocation11 + $0xd8] sm:$0xff]
    %v302 = vld [vmem:[#allocation11 + $0xe0] sm:$0xff]
    %v303 = vld [vmem:[#allocation11 + $0xe8] sm:$0xff]
    %v304 = vld [vmem:[#allocation11 + $0xf0] sm:$0xff]
    %v305 = vld [vmem:[#allocation11 + $0xf8] sm:$0xff]
    %306 = vmatprep.subr.mxu0 %v275
    %307 = vmatpush1.msra.mxu0 %v274
    %308 = vmatprep.subr.mxu0 %v277
    %309 = vmatpush1.msra.mxu0 %v276
    %310 = vmatprep.subr.mxu0 %v279
    %311 = vmatpush1.msra.mxu0 %v278
    %312 = vmatprep.subr.mxu0 %v281
    %313 = vmatpush1.msra.mxu0 %v280
    %314 = vmatprep.subr.mxu0 %v283
    %315 = vmatpush1.msra.mxu0 %v282
    %316 = vmatprep.subr.mxu0 %v285
    %317 = vmatpush1.msra.mxu0 %v284
    %318 = vmatprep.subr.mxu0 %v287
    %319 = vmatpush1.msra.mxu0 %v286
    %320 = vmatprep.subr.mxu0 %v289
    %321 = vmatpush1.msra.mxu0 %v288
    %322 = vmatprep.subr.mxu0 %v291
    %323 = vmatpush1.msra.mxu0 %v290
    %324 = vmatprep.subr.mxu0 %v293
    %325 = vmatpush1.msra.mxu0 %v292
    %326 = vmatprep.subr.mxu0 %v295
    %327 = vmatpush1.msra.mxu0 %v294
    %328 = vmatprep.subr.mxu0 %v297
    %329 = vmatpush1.msra.mxu0 %v296
    %330 = vmatprep.subr.mxu0 %v299
    %331 = vmatpush1.msra.mxu0 %v298
    %332 = vmatprep.subr.mxu0 %v301
    %333 = vmatpush1.msra.mxu0 %v300
    %334 = vmatprep.subr.mxu0 %v303
    %335 = vmatpush1.msra.mxu0 %v302
    %336 = vmatprep.subr.mxu0 %v305
    %337 = vmatpush1.msra.mxu0 %v304
    %338 = vmatprep.subr.mxu0 0.0
    %339 = vmatpush1.msra.mxu0 0.0
    %340 = vmatprep.subr.mxu0 0.0
    %341 = vmatpush1.msra.mxu0 0.0
    %342 = vmatprep.subr.mxu0 0.0
    %343 = vmatpush1.msra.mxu0 0.0
    %344 = vmatprep.subr.mxu0 0.0
    %345 = vmatpush1.msra.mxu0 0.0
    %346 = vmatprep.subr.mxu0 0.0
    %347 = vmatpush1.msra.mxu0 0.0
    %348 = vmatprep.subr.mxu0 0.0
    %349 = vmatpush1.msra.mxu0 0.0
    %350 = vmatprep.subr.mxu0 0.0
    %351 = vmatpush1.msra.mxu0 0.0
    %352 = vmatprep.subr.mxu0 0.0
    %353 = vmatpush1.msra.mxu0 0.0
    %354 = vmatprep.subr.mxu0 0.0
    %355 = vmatpush1.msra.mxu0 0.0
    %356 = vmatprep.subr.mxu0 0.0
    %357 = vmatpush1.msra.mxu0 0.0
    %358 = vmatprep.subr.mxu0 0.0
    %359 = vmatpush1.msra.mxu0 0.0
    %360 = vmatprep.subr.mxu0 0.0
    %361 = vmatpush1.msra.mxu0 0.0
    %362 = vmatprep.subr.mxu0 0.0
    %363 = vmatpush1.msra.mxu0 0.0
    %364 = vmatprep.subr.mxu0 0.0
    %365 = vmatpush1.msra.mxu0 0.0
    %366 = vmatprep.subr.mxu0 0.0
    %367 = vmatpush1.msra.mxu0 0.0
    %368 = vmatprep.subr.mxu0 0.0
    %369 = vmatpush1.msra.mxu0 0.0
    %370 = vmatprep.mubr.f32.mxu0 0.0
    %371 = vmatmul.mubr.f32.gmra.mrb[0].mxu0 %v273
    %v372 = vpop.f32.mrb[0].mxu0
    %v373 = vadd.f32 0.0, %v372
    %v374 = vpop.f32.mrb[0].mxu0
    %v375 = vadd.f32 0.0, %v374
    %376 = vdwg.mxu0
    %v377 = vadd.f32 %v271, %v373
    %v378 = vadd.f32 %v272, %v375
    %379 = vst [vmem:[#allocation2] sm:$0xff] %v377
    %380 = vst [vmem:[#allocation2 + $0x8] sm:$0xff] %v378
    %v381 = vld [vmem:[#allocation2] sm:$0xff]
    %v382 = vld [vmem:[#allocation2 + $0x8] sm:$0xff]
    %v383 = vld [vmem:[#allocation8] sm:$0xff]
    %v384 = vld [vmem:[#allocation12] sm:$0xff]
    %v385 = vld [vmem:[#allocation12 + $0x8] sm:$0xff]
    %v386 = vld [vmem:[#allocation12 + $0x10] sm:$0xff]
    %v387 = vld [vmem:[#allocation12 + $0x18] sm:$0xff]
    %v388 = vld [vmem:[#allocation12 + $0x20] sm:$0xff]
    %v389 = vld [vmem:[#allocation12 + $0x28] sm:$0xff]
    %v390 = vld [vmem:[#allocation12 + $0x30] sm:$0xff]
    %v391 = vld [vmem:[#allocation12 + $0x38] sm:$0xff]
    %v392 = vld [vmem:[#allocation12 + $0x40] sm:$0xff]
    %v393 = vld [vmem:[#allocation12 + $0x48] sm:$0xff]
    %v394 = vld [vmem:[#allocation12 + $0x50] sm:$0xff]
    %v395 = vld [vmem:[#allocation12 + $0x58] sm:$0xff]
    %v396 = vld [vmem:[#allocation12 + $0x60] sm:$0xff]
    %v397 = vld [vmem:[#allocation12 + $0x68] sm:$0xff]
    %v398 = vld [vmem:[#allocation12 + $0x70] sm:$0xff]
    %v399 = vld [vmem:[#allocation12 + $0x78] sm:$0xff]
    %v400 = vld [vmem:[#allocation12 + $0x80] sm:$0xff]
    %v401 = vld [vmem:[#allocation12 + $0x88] sm:$0xff]
    %v402 = vld [vmem:[#allocation12 + $0x90] sm:$0xff]
    %v403 = vld [vmem:[#allocation12 + $0x98] sm:$0xff]
    %v404 = vld [vmem:[#allocation12 + $0xa0] sm:$0xff]
    %v405 = vld [vmem:[#allocation12 + $0xa8] sm:$0xff]
    %v406 = vld [vmem:[#allocation12 + $0xb0] sm:$0xff]
    %v407 = vld [vmem:[#allocation12 + $0xb8] sm:$0xff]
    %v408 = vld [vmem:[#allocation12 + $0xc0] sm:$0xff]
    %v409 = vld [vmem:[#allocation12 + $0xc8] sm:$0xff]
    %v410 = vld [vmem:[#allocation12 + $0xd0] sm:$0xff]
    %v411 = vld [vmem:[#allocation12 + $0xd8] sm:$0xff]
    %v412 = vld [vmem:[#allocation12 + $0xe0] sm:$0xff]
    %v413 = vld [vmem:[#allocation12 + $0xe8] sm:$0xff]
    %v414 = vld [vmem:[#allocation12 + $0xf0] sm:$0xff]
    %v415 = vld [vmem:[#allocation12 + $0xf8] sm:$0xff]
    %416 = vmatprep.subr.mxu0 %v385
    %417 = vmatpush1.msra.mxu0 %v384
    %418 = vmatprep.subr.mxu0 %v387
    %419 = vmatpush1.msra.mxu0 %v386
    %420 = vmatprep.subr.mxu0 %v389
    %421 = vmatpush1.msra.mxu0 %v388
    %422 = vmatprep.subr.mxu0 %v391
    %423 = vmatpush1.msra.mxu0 %v390
    %424 = vmatprep.subr.mxu0 %v393
    %425 = vmatpush1.msra.mxu0 %v392
    %426 = vmatprep.subr.mxu0 %v395
    %427 = vmatpush1.msra.mxu0 %v394
    %428 = vmatprep.subr.mxu0 %v397
    %429 = vmatpush1.msra.mxu0 %v396
    %430 = vmatprep.subr.mxu0 %v399
    %431 = vmatpush1.msra.mxu0 %v398
    %432 = vmatprep.subr.mxu0 %v401
    %433 = vmatpush1.msra.mxu0 %v400
    %434 = vmatprep.subr.mxu0 %v403
    %435 = vmatpush1.msra.mxu0 %v402
    %436 = vmatprep.subr.mxu0 %v405
    %437 = vmatpush1.msra.mxu0 %v404
    %438 = vmatprep.subr.mxu0 %v407
    %439 = vmatpush1.msra.mxu0 %v406
    %440 = vmatprep.subr.mxu0 %v409
    %441 = vmatpush1.msra.mxu0 %v408
    %442 = vmatprep.subr.mxu0 %v411
    %443 = vmatpush1.msra.mxu0 %v410
    %444 = vmatprep.subr.mxu0 %v413
    %445 = vmatpush1.msra.mxu0 %v412
    %446 = vmatprep.subr.mxu0 %v415
    %447 = vmatpush1.msra.mxu0 %v414
    %448 = vmatprep.subr.mxu0 0.0
    %449 = vmatpush1.msra.mxu0 0.0
    %450 = vmatprep.subr.mxu0 0.0
    %451 = vmatpush1.msra.mxu0 0.0
    %452 = vmatprep.subr.mxu0 0.0
    %453 = vmatpush1.msra.mxu0 0.0
    %454 = vmatprep.subr.mxu0 0.0
    %455 = vmatpush1.msra.mxu0 0.0
    %456 = vmatprep.subr.mxu0 0.0
    %457 = vmatpush1.msra.mxu0 0.0
    %458 = vmatprep.subr.mxu0 0.0
    %459 = vmatpush1.msra.mxu0 0.0
    %460 = vmatprep.subr.mxu0 0.0
    %461 = vmatpush1.msra.mxu0 0.0
    %462 = vmatprep.subr.mxu0 0.0
    %463 = vmatpush1.msra.mxu0 0.0
    %464 = vmatprep.subr.mxu0 0.0
    %465 = vmatpush1.msra.mxu0 0.0
    %466 = vmatprep.subr.mxu0 0.0
    %467 = vmatpush1.msra.mxu0 0.0
    %468 = vmatprep.subr.mxu0 0.0
    %469 = vmatpush1.msra.mxu0 0.0
    %470 = vmatprep.subr.mxu0 0.0
    %471 = vmatpush1.msra.mxu0 0.0
    %472 = vmatprep.subr.mxu0 0.0
    %473 = vmatpush1.msra.mxu0 0.0
    %474 = vmatprep.subr.mxu0 0.0
    %475 = vmatpush1.msra.mxu0 0.0
    %476 = vmatprep.subr.mxu0 0.0
    %477 = vmatpush1.msra.mxu0 0.0
    %478 = vmatprep.subr.mxu0 0.0
    %479 = vmatpush1.msra.mxu0 0.0
    %480 = vmatprep.mubr.f32.mxu0 0.0
    %481 = vmatmul.mubr.f32.gmra.mrb[0].mxu0 %v383
    %v482 = vpop.f32.mrb[0].mxu0
    %v483 = vadd.f32 0.0, %v482
    %v484 = vpop.f32.mrb[0].mxu0
    %v485 = vadd.f32 0.0, %v484
    %486 = vdwg.mxu0
    %v487 = vadd.f32 %v381, %v483
    %v488 = vadd.f32 %v382, %v485
    %489 = vst [vmem:[#allocation2] sm:$0xff] %v487
    %490 = vst [vmem:[#allocation2 + $0x8] sm:$0xff] %v488
    // Predicated region
    $region78: #{ran_cell_forward.1} parent=1 // pred_check
      %p491 = pneg %p143
    $region79: #{ran_cell_forward.1} parent=1 // pred_check_branch
      %493 = sbr.rel (%p491) target = $region81
    $region80: #{ran_cell_forward.1} parent=1 // pred_region
      %v494 = vld [vmem:[#allocation2] sm:$0xff]
      %v495 = vld [vmem:[#allocation2 + $0x8] sm:$0xff]
      %v496 = vxor.u32 %v494, 2147483648
      %v497 = vmul.f32 %v496, 1.442695
      %v498 = vpow.pop %v497
      %v499 = vadd.f32 %v498, 1.0
      %v500 = vrcp.pop %v499
      %v501 = vmul.f32 1.0, %v500
      %v502 = vxor.u32 %v495, 2147483648
      %v503 = vmul.f32 %v502, 1.442695
      %v504 = vpow.pop %v503
      %v505 = vadd.f32 %v504, 1.0
      %v506 = vrcp.pop %v505
      %v507 = vmul.f32 1.0, %v506
      %v508 = vld [vmem:[#allocation15] sm:$0xff]
      %v509 = vmul.f32 %v508, %v507
      %v510 = vld [vmem:[#allocation17] sm:$0xff]
      %v511 = vmul.f32 %v501, %v510
      %v512 = vadd.f32 %v509, %v511
      %513 = vst [vmem:[#allocation18] sm:$0xff] %v512
    $region81: #{ran_cell_forward.1} parent=1 // pred_fallthru
      _
    // Predicated region
    $region82: #{ran_cell_forward.1} parent=1 // pred_check
      _
    $region83: #{ran_cell_forward.1} parent=1 // pred_check_branch
      %515 = sbr.rel (0) target = $region85
    $region84: #{ran_cell_forward.1} parent=1 // pred_region
      %s517 = ssub.s32 128, 128
      %518 = vsyncadd [#allocation5], %s517
      %s520 = sshll.u32 [#allocation18], 4
      %s521 = int_to_ptr.vmem [resolvable:$true] %s520
      %523 = dma.vmem_to_hbm [thread:$0]  %s521, 128, %s9, [#allocation5]
    $region85: #{ran_cell_forward.1} parent=1 // pred_fallthru
      _
    // Predicated region
    $region86: #{ran_cell_forward.1} parent=1 // pred_check
      _
    $region87: #{ran_cell_forward.1} parent=1 // pred_check_branch
      %525 = sbr.rel (0) target = $region89
    $region88: #{ran_cell_forward.1} parent=1 // pred_region
      %526 = dma.done [#allocation5], 128
    $region89: #{ran_cell_forward.1} parent=1 // pred_fallthru
      _
    %527 = vsyncpa [#allocation4], 1
    %528 = vsyncpa [#allocation7], 1
    %529 = vsyncpa [#allocation10], 1
    %530 = vsyncpa [#allocation13], 1
    %531 = vsyncpa [#allocation16], 1
    %532 = vsyncpa [#allocation5], 1

</llo_original>
